<compile_context>
chip_gen: v6e
topology: v6e:2x2x1
jax: 0.10.0
libtpu: 0.0.40
codegen_flags: <defaults>
</compile_context>

<pallas_src>
import functools

import jax
import jax.numpy as jnp
from jax import lax
from jax.experimental import pallas as pl
from jax.experimental.pallas import tpu as pltpu

_LANES = 128
_TARGET_BLOCK_BYTES = 4 << 20   # ~4 MiB per input block per pipeline buffer


def _detect_tpu():
    """Best-effort (tensorcores_per_chip, vmem_capacity_bytes); never raises."""
    num_cores = 1
    vmem_bytes = 128 << 20
    try:
        vmem_bytes = int(pltpu.get_tpu_info().vmem_capacity_bytes)
    except Exception:
        pass
    try:
        kind = jax.devices()[0].device_kind.lower().replace(" ", "")
        if "v7" in kind or "tpu7" in kind:
            num_cores = 2                      # v7x: 2 TensorCores / chip
            vmem_bytes = min(vmem_bytes, 64 << 20)
    except Exception:
        pass
    return num_cores, vmem_bytes


_NUM_TC, _VMEM_BYTES = _detect_tpu()


def _make_kernel(rows, tile_rows, n_steps, sharded, needs_mask):
    """elem(z) = |z| * (0.5*|z| if |z| < 0.01 else 0.01)
               = 0.5*z^2   if |z| < 0.01 else 0.01*|z|.

    The constant -0.00005-per-element term of the reference L1 branch is
    folded into the wrapper, so zero-padded / masked / overhanging rows
    contribute exactly 0 to the kernel sum.
    """

    def kernel(x_ref, y_ref, out_ref):
        if sharded:
            c = pl.program_id(0)
            i = pl.program_id(1)
            tile_idx = c * n_steps + i
        else:
            i = pl.program_id(0)
            tile_idx = i

        @pl.when(i == 0)
        def _():
            out_ref[...] = jnp.zeros_like(out_ref)

        # Subtract in the input dtype, then promote — matches (x - y).float().
        az = jnp.abs((x_ref[...] - y_ref[...]).astype(jnp.float32))
        elem = az * jnp.where(az < jnp.float32(0.01),
                              jnp.float32(0.5) * az,
                              jnp.float32(0.01))

        def _accum(vals):
            # Lane-dense partial sums (one sublane reduce per ~4 MiB block);
            # the cross-lane reduction happens once, in the wrapper.
            out_ref[...] += jnp.sum(vals, axis=0, keepdims=True).reshape(out_ref.shape)

        if needs_mask:
            # Only partial / overhanging tiles pay for the row mask; full
            # tiles take the unmasked fast path (keeps a single v7x TC
            # mem-bound instead of VALU-bound).
            remaining = rows - tile_idx * tile_rows

            @pl.when(remaining >= tile_rows)
            def _():
                _accum(elem)

            @pl.when(remaining < tile_rows)
            def _():
                row_ids = lax.broadcasted_iota(jnp.int32, elem.shape, 0)
                _accum(jnp.where(row_ids < remaining, elem, jnp.float32(0.0)))
        else:
            _accum(elem)

    return kernel


@functools.partial(jax.jit, static_argnums=(2,))
def _loss_impl(x, y, num_shards):
    batch = x.shape[0]
    n_elem = x.size
    itemsize = jnp.dtype(x.dtype).itemsize

    xf = jnp.ravel(x)
    yf = jnp.ravel(y)

    # Pad up to the next multiple of 128 lanes (zero pad for typical NCHW
    # shapes, so usually no copy at all); padded zeros contribute exactly 0.
    # TODO(synk): for non-128-divisible sizes this pad still materializes one
    # extra copy of each input; a manual-DMA (pl.ANY) path could avoid it.
    pad = (-n_elem) % _LANES
    if pad:
        xf = jnp.pad(xf, (0, pad))
        yf = jnp.pad(yf, (0, pad))
    rows = (n_elem + pad) // _LANES
    x2 = xf.reshape(rows, _LANES)
    y2 = yf.reshape(rows, _LANES)

    # ~4 MiB blocks per input (multiple of 8 sublanes); full-dim if small.
    max_tile_rows = max(8, (_TARGET_BLOCK_BYTES // (_LANES * itemsize)) // 8 * 8)
    tile_rows = rows if rows <= max_tile_rows else max_tile_rows
    n_tiles = pl.cdiv(rows, tile_rows)

    sharded = (num_shards == 2) and (n_tiles >= 2)
    if sharded:
        # v7x: give each TensorCore half the tiles via CORE_PARALLEL.
        n_steps = pl.cdiv(n_tiles, 2)
        grid = (2, n_steps)
        needs_mask = (2 * n_steps * tile_rows) != rows

        def in_map(c, i):
            # Overhanging steps re-read the last valid block (fully masked
            # out in-kernel) instead of indexing past the array.
            return (jnp.minimum(c * n_steps + i, n_tiles - 1), 0)

        out_shape = jax.ShapeDtypeStruct((2, 1, _LANES), jnp.float32)
        out_spec = pl.BlockSpec((1, 1, _LANES), lambda c, i: (c, 0, 0))
        semantics = (pltpu.CORE_PARALLEL, pltpu.ARBITRARY)
    else:
        # Single-TC chips (v5e/v6e): plain 1-D grid, no clamp, mask only if
        # the last tile is partial.
        n_steps = n_tiles
        grid = (n_tiles,)
        needs_mask = (n_tiles * tile_rows) != rows
        in_map = lambda i: (i, 0)
        out_shape = jax.ShapeDtypeStruct((1, _LANES), jnp.float32)
        out_spec = pl.BlockSpec((1, _LANES), lambda i: (0, 0))
        semantics = (pltpu.ARBITRARY,)

    block_bytes = tile_rows * _LANES * itemsize
    # 2 inputs x 2 pipeline buffers + headroom; explicit because v5e's default
    # scoped VMEM is only 16 MiB, capped well inside v7x's 64 MiB physical.
    vmem_limit = int(max(4 * block_bytes + (4 << 20),
                         min(32 << 20, _VMEM_BYTES // 2)))

    tile_spec = pl.BlockSpec((tile_rows, _LANES), in_map)

    partials = pl.pallas_call(
        _make_kernel(rows, tile_rows, n_steps, sharded, needs_mask),
        out_shape=out_shape,
        grid_spec=pltpu.PrefetchScalarGridSpec(
            num_scalar_prefetch=0,
            grid=grid,
            in_specs=[tile_spec, tile_spec],
            out_specs=out_spec,
        ),
        compiler_params=pltpu.CompilerParams(
            dimension_semantics=semantics,
            vmem_limit_bytes=vmem_limit),
    )(x2, y2)

    # Fold in the constant -0.00005 * n_elem contributed by the L1 branch of
    # the reference over *every* element, then divide by batch (z.shape[0]).
    loss_sum = jnp.sum(partials) - jnp.float32(0.01 * 0.005) * jnp.float32(n_elem)
    return loss_sum / jnp.float32(batch)


def modified_smooth_l1_loss(x, y):
    assert x.shape == y.shape
    if _NUM_TC >= 2:
        try:
            return _loss_impl(x, y, 2)
        except Exception:
            pass  # fall back to the single-TensorCore build
    return _loss_impl(x, y, 1)


def _reference(x, y):
    """Pure-JAX reference mirroring the PyTorch forward exactly."""
    z = (x - y).astype(jnp.float32)
    az = jnp.abs(z)
    mse = jnp.where(az < 0.01, z, 0.0)
    l1 = jnp.where(az >= 0.01, z, 0.0)
    total = jnp.sum(0.5 * mse * mse) + jnp.sum(0.01 * (jnp.abs(l1) - 0.005))
    return total / z.shape[0]


if __name__ == "__main__":
    key = jax.random.PRNGKey(0)
    kx, ky = jax.random.split(key)
    shape = (2, 4, 16, 16)  # NCHW, small synthetic input
    # Mix small and large differences so both branches (|z| < 0.01, >= 0.01)
    # are exercised.
    x = jax.random.normal(kx, shape, dtype=jnp.float32) * 0.02
    y = jax.random.normal(ky, shape, dtype=jnp.float32) * 0.02

    out = modified_smooth_l1_loss(x, y)
    out = jax.block_until_ready(out)

    ref = _reference(x, y)
    assert jnp.allclose(out, ref, rtol=1e-5, atol=1e-6), (out, ref)
    print("KERNEL_OK")
</pallas_src>

<mosaic_0001>
module attributes {stable_mosaic.version = 11 : i64} {
  func.func @kernel(%arg0: i32, %arg1: memref<16x128xf32, #tpu.memory_space<vmem>>, %arg2: memref<16x128xf32, #tpu.memory_space<vmem>>, %arg3: memref<1x128xf32, #tpu.memory_space<vmem>>) attributes {dimension_semantics = [#tpu.dimension_semantics<arbitrary>], iteration_bounds = array<i64: 1>, scalar_prefetch = 0 : i64, scratch_operands = 0 : i64, tpu.core_type = #tpu.core_type<tc>, window_params = [{transform_indices = @transform_0, window_bounds = array<i64: 16, 128>}, {transform_indices = @transform_1, window_bounds = array<i64: 16, 128>}, {pipeline_mode = #tpu.pipeline_mode<synchronous>, transform_indices = @transform_2, window_bounds = array<i64: 1, 128>}]} {
    %c0_i32 = arith.constant 0 : i32
    %0 = arith.cmpi eq, %arg0, %c0_i32 : i32
    %1 = arith.extui %0 : i1 to i32
    %c0_i32_0 = arith.constant 0 : i32
    %2 = arith.cmpi ne, %1, %c0_i32_0 : i32
    scf.if %2 {
      %cst_11 = arith.constant 0.000000e+00 : f32
      %19 = vector.broadcast %cst_11 : f32 to vector<1x128xf32>
      %c0_12 = arith.constant 0 : index
      %c0_13 = arith.constant 0 : index
      %20 = vector.load %arg3[%c0_12, %c0_13] : memref<1x128xf32, #tpu.memory_space<vmem>>, vector<1x128xf32>
      tpu.vector_store %arg3[%c0_12, %c0_13], %19 {strides = array<i32>} : memref<1x128xf32, #tpu.memory_space<vmem>>, vector<1x128xf32>,
    } else {
    }
    %c0 = arith.constant 0 : index
    %c0_1 = arith.constant 0 : index
    %3 = vector.load %arg1[%c0, %c0_1] : memref<16x128xf32, #tpu.memory_space<vmem>>, vector<16x128xf32>
    %c0_2 = arith.constant 0 : index
    %c0_3 = arith.constant 0 : index
    %4 = vector.load %arg2[%c0_2, %c0_3] : memref<16x128xf32, #tpu.memory_space<vmem>>, vector<16x128xf32>
    %5 = arith.subf %3, %4 : vector<16x128xf32>
    %6 = math.absf %5 : vector<16x128xf32>
    %cst = arith.constant 0.00999999977 : f32
    %7 = vector.broadcast %cst : f32 to vector<16x128xf32>
    %8 = arith.cmpf olt, %6, %7 : vector<16x128xf32>
    %cst_4 = arith.constant 5.000000e-01 : f32
    %9 = vector.broadcast %cst_4 : f32 to vector<16x128xf32>
    %10 = arith.mulf %9, %6 : vector<16x128xf32>
    %cst_5 = arith.constant 0.00999999977 : f32
    %11 = vector.broadcast %cst_5 : f32 to vector<16x128xf32>
    %12 = arith.select %8, %10, %11 : vector<16x128xi1>, vector<16x128xf32>
    %13 = arith.mulf %6, %12 : vector<16x128xf32>
    %c0_6 = arith.constant 0 : index
    %c0_7 = arith.constant 0 : index
    %14 = vector.load %arg3[%c0_6, %c0_7] : memref<1x128xf32, #tpu.memory_space<vmem>>, vector<1x128xf32>
    %cst_8 = arith.constant dense<0.000000e+00> : vector<128xf32>
    %15 = vector.multi_reduction <add>, %13, %cst_8 [0] : vector<16x128xf32> to vector<128xf32>
    %16 = vector.shape_cast %15 : vector<128xf32> to vector<1x128xf32>
    %17 = arith.addf %14, %16 : vector<1x128xf32>
    %c0_9 = arith.constant 0 : index
    %c0_10 = arith.constant 0 : index
    %18 = vector.load %arg3[%c0_9, %c0_10] : memref<1x128xf32, #tpu.memory_space<vmem>>, vector<1x128xf32>
    tpu.vector_store %arg3[%c0_9, %c0_10], %17 {strides = array<i32>} : memref<1x128xf32, #tpu.memory_space<vmem>>, vector<1x128xf32>,
    return
  }
  func.func @transform_0(%arg0: i32) -> (i32, i32) {
    %c0_i32 = arith.constant 0 : i32
    %c0_i32_0 = arith.constant 0 : i32
    return %arg0, %c0_i32 : i32, i32
  }
  func.func @transform_1(%arg0: i32) -> (i32, i32) {
    %c0_i32 = arith.constant 0 : i32
    %c0_i32_0 = arith.constant 0 : i32
    return %arg0, %c0_i32 : i32, i32
  }
  func.func @transform_2(%arg0: i32) -> (i32, i32) {
    %c0_i32 = arith.constant 0 : i32
    %c0_i32_0 = arith.constant 0 : i32
    %c0_i32_1 = arith.constant 0 : i32
    return %c0_i32, %c0_i32_0 : i32, i32
  }
}

</mosaic_0001>

<llo_original>
// kernel: _loss_impl.1
$region0: #{_loss_impl.1}
  #allocation0 [shape = 'u32[]', space=smem, size = 0x4, offset = 0x4, fixed_abs, tag = 'smem constant byte address 0x4 - core index']
  #allocation1 [shape = 'u32[144,128]{1,0:T(1,128)}', space=vmem, size = 0x12000, scoped, tag = 'internal scratch']
  %s0 = inlined_call_operand.vmem [shape: f32[16,128], index: 0, kind: input, shape index: {}]
  %s1 = inlined_call_operand.vmem [shape: f32[16,128], index: 1, kind: input, shape index: {}]
  %s2 = inlined_call_operand.vmem [shape: f32[1,128], index: 2, kind: output, shape index: {}]
  %s3 = sld [smem:[#allocation0]]
  $region22: #{_loss_impl.1} parent=0
    _
  %s5 = ssub.s32 1, %s3
  %s6 = scalar_select 0, %s5, %s3
  // Predicated region
  $region2: #{_loss_impl.1} parent=0 // pred_check
    _
  $region3: #{_loss_impl.1} parent=0 // pred_check_branch
    %8 = sbr.rel (0) target = $region5
  $region4: #{_loss_impl.1} parent=0 // pred_region
    _
  $region5: #{_loss_impl.1} parent=0 // pred_fallthru
    _
  // Predicated region
  $region6: #{_loss_impl.1} parent=0 // pred_check
    _
  $region7: #{_loss_impl.1} parent=0 // pred_check_branch
    %10 = sbr.rel (0) target = $region9
  $region8: #{_loss_impl.1} parent=0 // pred_region
    _
  $region9: #{_loss_impl.1} parent=0 // pred_fallthru
    _
  %p11 = scmp.eq.s32.totalorder 0, 0
  // Predicated region
  $region10: #{_loss_impl.1} parent=0 // pred_check
    %p12 = pneg %p11
  $region11: #{_loss_impl.1} parent=0 // pred_check_branch
    %14 = sbr.rel (%p12) target = $region13
  $region12: #{_loss_impl.1} parent=0 // pred_region
    %15 = vst [vmem:[%s2] sm:$0x1] 0.0
  $region13: #{_loss_impl.1} parent=0 // pred_fallthru
    _
  %v16 = vld [vmem:[%s0] sm:$0xff]
  %v17 = vld [vmem:[%s0 + $0x8] sm:$0xff]
  %v18 = vld [vmem:[%s1] sm:$0xff]
  %v19 = vld [vmem:[%s1 + $0x8] sm:$0xff]
  %v20 = vsub.f32 %v16, %v18
  %v21 = vsub.f32 %v17, %v19
  %v22 = vand.u32 2147483647, %v20
  %v23 = vand.u32 2147483647, %v21
  %vm24 = vcmp.lt.f32.partialorder %v22, 0.01
  %vm25 = vcmp.lt.f32.partialorder %v23, 0.01
  %v26 = vmul.f32 %v22, 0.5
  %v27 = vmul.f32 %v23, 0.5
  %v28 = vsel %vm24, %v26, 0.01
  %v29 = vsel %vm25, %v27, 0.01
  %v30 = vmul.f32 %v22, %v28
  %v31 = vmul.f32 %v23, %v29
  %v32 = vld [vmem:[%s2] sm:$0x1]
  %v33 = vadd.f32 %v30, %v31
  %v34 = vrot.slane %v33, 4
  %v35 = vadd.f32 %v33, %v34
  %v36 = vrot.slane %v35, 2
  %v37 = vadd.f32 %v35, %v36
  %v38 = vrot.slane %v37, 1
  %v39 = vadd.f32 %v37, %v38
  %v40 = vadd.f32 %v32, %v39
  %41 = vst [vmem:[%s2] sm:$0x1] %v40
  // Predicated region
  $region14: #{_loss_impl.1} parent=0 // pred_check
    _
  $region15: #{_loss_impl.1} parent=0 // pred_check_branch
    %43 = sbr.rel (0) target = $region17
  $region16: #{_loss_impl.1} parent=0 // pred_region
    _
  $region17: #{_loss_impl.1} parent=0 // pred_fallthru
    _
  // Predicated region
  $region18: #{_loss_impl.1} parent=0 // pred_check
    _
  $region19: #{_loss_impl.1} parent=0 // pred_check_branch
    %45 = sbr.rel (0) target = $region21
  $region20: #{_loss_impl.1} parent=0 // pred_region
    _
  $region21: #{_loss_impl.1} parent=0 // pred_fallthru
    _

</llo_original>
